<compile_context>
chip_gen: v5e
topology: v5e:2x2
jax: 0.10.0
libtpu: 0.0.40
codegen_flags: <defaults>
</compile_context>

<pallas_src>
import jax
import jax.numpy as jnp
from jax.experimental import pallas as pl
from jax.experimental.pallas import tpu as pltpu

EPS = 1e-3
MOMENTUM = 0.01


def _bn_kernel(x_ref, gamma_ref, beta_ref, y_ref, mean_ref, var_ref):
    # x_ref: (N, Cb, HW)  -- channels on sublanes, spatial on lanes
    # gamma_ref / beta_ref / mean_ref / var_ref: (1, Cb, 1)
    x = x_ref[...].astype(jnp.float32)
    n, _, hw = x.shape
    m = n * hw
    inv_m = 1.0 / m

    # Per-channel mean, then centered (numerically safe) variance.
    mean = jnp.sum(x, axis=(0, 2), keepdims=True) * inv_m          # (1, Cb, 1)
    xc = x - mean
    var_biased = jnp.sum(xc * xc, axis=(0, 2), keepdims=True) * inv_m

    inv_std = jax.lax.rsqrt(var_biased + EPS)
    scale = inv_std * gamma_ref[...].astype(jnp.float32)
    y_ref[...] = (xc * scale + beta_ref[...].astype(jnp.float32)).astype(y_ref.dtype)

    # Stats outputs for the running-stat update in the wrapper.
    mean_ref[...] = mean
    # PyTorch updates running_var with the UNBIASED estimate (divide by m-1),
    # while normalizing with the biased one.
    var_ref[...] = var_biased * (m / (m - 1)) if m > 1 else var_biased


def batchnorm2d(x_nchw, gamma, beta, running_mean=None, running_var=None,
                momentum=MOMENTUM):
    """Training-mode BatchNorm2d forward.

    Returns (y, new_running_mean, new_running_var); the running stats are None
    if running_mean/running_var are not supplied.
    """
    n, c, h, w = x_nchw.shape
    hw = h * w

    # Pure reshapes (contiguous views) -- no transpose, no extra HBM traffic.
    x3d = x_nchw.reshape(n, c, hw)
    gamma3d = gamma.reshape(1, c, 1)
    beta3d = beta.reshape(1, c, 1)

    # Block-size selection: single block while the (x in + y out, f32) working
    # set is tiny (this call is overhead-bound); split the channel axis into
    # multiples of 8 once it grows, which keeps the per-channel reduction
    # single-pass, caps VMEM (important on v7x: 64 MiB), and lets the parallel
    # grid use both v7x TensorCores.
    slab_bytes = 2 * n * c * hw * 4
    c_block = c
    if slab_bytes > (8 << 20):
        for cand in (128, 64, 32, 16, 8):
            if c % cand == 0:
                c_block = cand
                break
    grid = (c // c_block,)

    y3d, mean, var_unbiased = pl.pallas_call(
        _bn_kernel,
        out_shape=(
            jax.ShapeDtypeStruct((n, c, hw), x_nchw.dtype),
            jax.ShapeDtypeStruct((1, c, 1), jnp.float32),
            jax.ShapeDtypeStruct((1, c, 1), jnp.float32),
        ),
        grid=grid,
        in_specs=[
            pl.BlockSpec((n, c_block, hw), lambda i: (0, i, 0)),
            pl.BlockSpec((1, c_block, 1), lambda i: (0, i, 0)),
            pl.BlockSpec((1, c_block, 1), lambda i: (0, i, 0)),
        ],
        out_specs=(
            pl.BlockSpec((n, c_block, hw), lambda i: (0, i, 0)),
            pl.BlockSpec((1, c_block, 1), lambda i: (0, i, 0)),
            pl.BlockSpec((1, c_block, 1), lambda i: (0, i, 0)),
        ),
        input_output_aliases={0: 0},  # normalized output reuses x's HBM buffer
        compiler_params=pltpu.CompilerParams(
            dimension_semantics=("parallel",)),
    )(x3d, gamma3d, beta3d)

    y = y3d.reshape(n, c, h, w)

    # Momentum update on the tiny (C,) stats in the wrapper; the activation is
    # read only once (inside the kernel).
    new_running_mean = new_running_var = None
    if running_mean is not None and running_var is not None:
        bm = mean.reshape(c).astype(running_mean.dtype)
        bv = var_unbiased.reshape(c).astype(running_var.dtype)
        new_running_mean = (1.0 - momentum) * running_mean + momentum * bm
        new_running_var = (1.0 - momentum) * running_var + momentum * bv

    return y, new_running_mean, new_running_var


def _reference_bn(x_nchw, gamma, beta):
    mean = jnp.mean(x_nchw, axis=(0, 2, 3), keepdims=True)
    var = jnp.mean((x_nchw - mean) ** 2, axis=(0, 2, 3), keepdims=True)
    return ((x_nchw - mean) / jnp.sqrt(var + EPS)
            * gamma.reshape(1, -1, 1, 1) + beta.reshape(1, -1, 1, 1))


if __name__ == "__main__":
    key = jax.random.PRNGKey(0)
    N, C, H, W = 1, 160, 14, 14  # matches the module's BatchNorm2d(160) input
    x = jax.random.normal(key, (N, C, H, W), dtype=jnp.float32)

    # PyTorch BatchNorm2d default init: weight=1, bias=0, running_mean=0, running_var=1.
    gamma = jnp.ones((C,), dtype=jnp.float32)
    beta = jnp.zeros((C,), dtype=jnp.float32)
    running_mean = jnp.zeros((C,), dtype=jnp.float32)
    running_var = jnp.ones((C,), dtype=jnp.float32)

    y, new_rm, new_rv = batchnorm2d(x, gamma, beta, running_mean, running_var)
    jax.block_until_ready((y, new_rm, new_rv))

    # --- correctness checks ---
    ref = _reference_bn(x, gamma, beta)
    assert y.shape == (N, C, H, W)
    assert jnp.allclose(y, ref, atol=1e-4, rtol=1e-4)

    m = N * H * W
    bm_ref = jnp.mean(x, axis=(0, 2, 3))
    bv_ref = jnp.var(x, axis=(0, 2, 3)) * (m / (m - 1))  # unbiased, PyTorch parity
    ref_rm = (1.0 - MOMENTUM) * running_mean + MOMENTUM * bm_ref
    ref_rv = (1.0 - MOMENTUM) * running_var + MOMENTUM * bv_ref
    assert jnp.allclose(new_rm, ref_rm, atol=1e-5, rtol=1e-5)
    assert jnp.allclose(new_rv, ref_rv, atol=1e-5, rtol=1e-5)

    print("KERNEL_OK")
</pallas_src>

<mosaic_0001>
module attributes {stable_mosaic.version = 11 : i64} {
  func.func @_bn_kernel(%arg0: i32, %arg1: memref<1x160x196xf32, #tpu.memory_space<vmem>>, %arg2: memref<1x160x1xf32, #tpu.memory_space<vmem>>, %arg3: memref<1x160x1xf32, #tpu.memory_space<vmem>>, %arg4: memref<1x160x196xf32, #tpu.memory_space<vmem>>, %arg5: memref<1x160x1xf32, #tpu.memory_space<vmem>>, %arg6: memref<1x160x1xf32, #tpu.memory_space<vmem>>) attributes {dimension_semantics = [#tpu.dimension_semantics<parallel>], iteration_bounds = array<i64: 1>, scalar_prefetch = 0 : i64, scratch_operands = 0 : i64, tpu.core_type = #tpu.core_type<tc>, window_params = [{transform_indices = @transform_0, window_bounds = array<i64: 1, 160, 196>}, {transform_indices = @transform_1, window_bounds = array<i64: 1, 160, 1>}, {transform_indices = @transform_2, window_bounds = array<i64: 1, 160, 1>}, {transform_indices = @transform_3, window_bounds = array<i64: 1, 160, 196>}, {transform_indices = @transform_4, window_bounds = array<i64: 1, 160, 1>}, {transform_indices = @transform_5, window_bounds = array<i64: 1, 160, 1>}]} {
    %c0 = arith.constant 0 : index
    %c0_0 = arith.constant 0 : index
    %c0_1 = arith.constant 0 : index
    %0 = vector.load %arg1[%c0, %c0_0, %c0_1] : memref<1x160x196xf32, #tpu.memory_space<vmem>>, vector<1x160x196xf32>
    %cst = arith.constant dense<0.000000e+00> : vector<160xf32>
    %1 = vector.multi_reduction <add>, %0, %cst [0, 2] : vector<1x160x196xf32> to vector<160xf32>
    %2 = vector.shape_cast %1 : vector<160xf32> to vector<1x160x1xf32>
    %cst_2 = arith.constant 0.00510204071 : f32
    %3 = vector.broadcast %cst_2 : f32 to vector<1x160x1xf32>
    %4 = arith.mulf %2, %3 : vector<1x160x1xf32>
    %5 = vector.broadcast %4 : vector<1x160x1xf32> to vector<1x160x196xf32>
    %6 = arith.subf %0, %5 : vector<1x160x196xf32>
    %7 = arith.mulf %6, %6 : vector<1x160x196xf32>
    %cst_3 = arith.constant dense<0.000000e+00> : vector<160xf32>
    %8 = vector.multi_reduction <add>, %7, %cst_3 [0, 2] : vector<1x160x196xf32> to vector<160xf32>
    %9 = vector.shape_cast %8 : vector<160xf32> to vector<1x160x1xf32>
    %cst_4 = arith.constant 0.00510204071 : f32
    %10 = vector.broadcast %cst_4 : f32 to vector<1x160x1xf32>
    %11 = arith.mulf %9, %10 : vector<1x160x1xf32>
    %cst_5 = arith.constant 1.000000e-03 : f32
    %12 = vector.broadcast %cst_5 : f32 to vector<1x160x1xf32>
    %13 = arith.addf %11, %12 : vector<1x160x1xf32>
    %14 = math.rsqrt %13 : vector<1x160x1xf32>
    %c0_6 = arith.constant 0 : index
    %c0_7 = arith.constant 0 : index
    %c0_8 = arith.constant 0 : index
    %15 = vector.load %arg2[%c0_6, %c0_7, %c0_8] : memref<1x160x1xf32, #tpu.memory_space<vmem>>, vector<1x160x1xf32>
    %16 = arith.mulf %14, %15 : vector<1x160x1xf32>
    %17 = vector.broadcast %16 : vector<1x160x1xf32> to vector<1x160x196xf32>
    %18 = arith.mulf %6, %17 : vector<1x160x196xf32>
    %c0_9 = arith.constant 0 : index
    %c0_10 = arith.constant 0 : index
    %c0_11 = arith.constant 0 : index
    %19 = vector.load %arg3[%c0_9, %c0_10, %c0_11] : memref<1x160x1xf32, #tpu.memory_space<vmem>>, vector<1x160x1xf32>
    %20 = vector.broadcast %19 : vector<1x160x1xf32> to vector<1x160x196xf32>
    %21 = arith.addf %18, %20 : vector<1x160x196xf32>
    %c0_12 = arith.constant 0 : index
    %c0_13 = arith.constant 0 : index
    %c0_14 = arith.constant 0 : index
    %22 = vector.load %arg4[%c0_12, %c0_13, %c0_14] : memref<1x160x196xf32, #tpu.memory_space<vmem>>, vector<1x160x196xf32>
    tpu.vector_store %arg4[%c0_12, %c0_13, %c0_14], %21 {strides = array<i32>} : memref<1x160x196xf32, #tpu.memory_space<vmem>>, vector<1x160x196xf32>,
    %c0_15 = arith.constant 0 : index
    %c0_16 = arith.constant 0 : index
    %c0_17 = arith.constant 0 : index
    %23 = vector.load %arg5[%c0_15, %c0_16, %c0_17] : memref<1x160x1xf32, #tpu.memory_space<vmem>>, vector<1x160x1xf32>
    tpu.vector_store %arg5[%c0_15, %c0_16, %c0_17], %4 {strides = array<i32>} : memref<1x160x1xf32, #tpu.memory_space<vmem>>, vector<1x160x1xf32>,
    %cst_18 = arith.constant 1.00512826 : f32
    %24 = vector.broadcast %cst_18 : f32 to vector<1x160x1xf32>
    %25 = arith.mulf %11, %24 : vector<1x160x1xf32>
    %c0_19 = arith.constant 0 : index
    %c0_20 = arith.constant 0 : index
    %c0_21 = arith.constant 0 : index
    %26 = vector.load %arg6[%c0_19, %c0_20, %c0_21] : memref<1x160x1xf32, #tpu.memory_space<vmem>>, vector<1x160x1xf32>
    tpu.vector_store %arg6[%c0_19, %c0_20, %c0_21], %25 {strides = array<i32>} : memref<1x160x1xf32, #tpu.memory_space<vmem>>, vector<1x160x1xf32>,
    return
  }
  func.func @transform_0(%arg0: i32) -> (i32, i32, i32) {
    %c0_i32 = arith.constant 0 : i32
    %c0_i32_0 = arith.constant 0 : i32
    %c0_i32_1 = arith.constant 0 : i32
    return %c0_i32, %arg0, %c0_i32_0 : i32, i32, i32
  }
  func.func @transform_1(%arg0: i32) -> (i32, i32, i32) {
    %c0_i32 = arith.constant 0 : i32
    %c0_i32_0 = arith.constant 0 : i32
    %c0_i32_1 = arith.constant 0 : i32
    return %c0_i32, %arg0, %c0_i32_0 : i32, i32, i32
  }
  func.func @transform_2(%arg0: i32) -> (i32, i32, i32) {
    %c0_i32 = arith.constant 0 : i32
    %c0_i32_0 = arith.constant 0 : i32
    %c0_i32_1 = arith.constant 0 : i32
    return %c0_i32, %arg0, %c0_i32_0 : i32, i32, i32
  }
  func.func @transform_3(%arg0: i32) -> (i32, i32, i32) {
    %c0_i32 = arith.constant 0 : i32
    %c0_i32_0 = arith.constant 0 : i32
    %c0_i32_1 = arith.constant 0 : i32
    return %c0_i32, %arg0, %c0_i32_0 : i32, i32, i32
  }
  func.func @transform_4(%arg0: i32) -> (i32, i32, i32) {
    %c0_i32 = arith.constant 0 : i32
    %c0_i32_0 = arith.constant 0 : i32
    %c0_i32_1 = arith.constant 0 : i32
    return %c0_i32, %arg0, %c0_i32_0 : i32, i32, i32
  }
  func.func @transform_5(%arg0: i32) -> (i32, i32, i32) {
    %c0_i32 = arith.constant 0 : i32
    %c0_i32_0 = arith.constant 0 : i32
    %c0_i32_1 = arith.constant 0 : i32
    return %c0_i32, %arg0, %c0_i32_0 : i32, i32, i32
  }
}

</mosaic_0001>

<llo_original>
// kernel: tpu_custom_call.1
$region0: #{tpu_custom_call.1}
  #allocation0 [shape = 'u32[]', space=smem, size = 0x4, offset = 0x4, fixed_abs, tag = 'smem constant byte address 0x4 - core index']
  #allocation1 [shape = 'u32[72,128]{1,0:T(1,128)}', space=vmem, size = 0x9000, scoped, tag = 'internal scratch']
  %s0 = inlined_call_operand.vmem [shape: f32[1,160,196], index: 0, kind: input, shape index: {}, may-alias: {0,3}]
  %s1 = inlined_call_operand.vmem [shape: f32[1,160,1], index: 1, kind: input, shape index: {}]
  %s2 = inlined_call_operand.vmem [shape: f32[1,160,1], index: 2, kind: input, shape index: {}]
  %s3 = inlined_call_operand.vmem [shape: f32[1,160,196], index: 3, kind: output, shape index: {0}, may-alias: {0,3}]
  %s4 = inlined_call_operand.vmem [shape: f32[1,160,1], index: 4, kind: output, shape index: {1}]
  %s5 = inlined_call_operand.vmem [shape: f32[1,160,1], index: 5, kind: output, shape index: {2}]
  %6 = xla_tuple %s3, %s4, %s5
  %s7 = sld [smem:[#allocation0]]
  $region38: #{tpu_custom_call.1} parent=0
    _
  %s9 = ssub.s32 1, %s7
  %s10 = scalar_select 0, %s9, %s7
  // Predicated region
  $region2: #{tpu_custom_call.1} parent=0 // pred_check
    _
  $region3: #{tpu_custom_call.1} parent=0 // pred_check_branch
    %12 = sbr.rel (0) target = $region5
  $region4: #{tpu_custom_call.1} parent=0 // pred_region
    _
  $region5: #{tpu_custom_call.1} parent=0 // pred_fallthru
    _
  // Predicated region
  $region6: #{tpu_custom_call.1} parent=0 // pred_check
    _
  $region7: #{tpu_custom_call.1} parent=0 // pred_check_branch
    %14 = sbr.rel (0) target = $region9
  $region8: #{tpu_custom_call.1} parent=0 // pred_region
    _
  $region9: #{tpu_custom_call.1} parent=0 // pred_fallthru
    _
  // Predicated region
  $region10: #{tpu_custom_call.1} parent=0 // pred_check
    _
  $region11: #{tpu_custom_call.1} parent=0 // pred_check_branch
    %16 = sbr.rel (0) target = $region13
  $region12: #{tpu_custom_call.1} parent=0 // pred_region
    _
  $region13: #{tpu_custom_call.1} parent=0 // pred_fallthru
    _
  %v17 = vld [vmem:[%s0] sm:$0xff]
  %v18 = vld [vmem:[%s0 + $0x8] sm:$0xff]
  %v19 = vld [vmem:[%s0 + $0x10] sm:$0xff]
  %v20 = vld [vmem:[%s0 + $0x18] sm:$0xff]
  %v21 = vld [vmem:[%s0 + $0x20] sm:$0xff]
  %v22 = vld [vmem:[%s0 + $0x28] sm:$0xff]
  %v23 = vld [vmem:[%s0 + $0x30] sm:$0xff]
  %v24 = vld [vmem:[%s0 + $0x38] sm:$0xff]
  %v25 = vld [vmem:[%s0 + $0x40] sm:$0xff]
  %v26 = vld [vmem:[%s0 + $0x48] sm:$0xff]
  %v27 = vld [vmem:[%s0 + $0x50] sm:$0xff]
  %v28 = vld [vmem:[%s0 + $0x58] sm:$0xff]
  %v29 = vld [vmem:[%s0 + $0x60] sm:$0xff]
  %v30 = vld [vmem:[%s0 + $0x68] sm:$0xff]
  %v31 = vld [vmem:[%s0 + $0x70] sm:$0xff]
  %v32 = vld [vmem:[%s0 + $0x78] sm:$0xff]
  %v33 = vld [vmem:[%s0 + $0x80] sm:$0xff]
  %v34 = vld [vmem:[%s0 + $0x88] sm:$0xff]
  %v35 = vld [vmem:[%s0 + $0x90] sm:$0xff]
  %v36 = vld [vmem:[%s0 + $0x98] sm:$0xff]
  %v37 = vld [vmem:[%s0 + $0xa0] sm:$0xff]
  %v38 = vld [vmem:[%s0 + $0xa8] sm:$0xff]
  %v39 = vld [vmem:[%s0 + $0xb0] sm:$0xff]
  %v40 = vld [vmem:[%s0 + $0xb8] sm:$0xff]
  %v41 = vld [vmem:[%s0 + $0xc0] sm:$0xff]
  %v42 = vld [vmem:[%s0 + $0xc8] sm:$0xff]
  %v43 = vld [vmem:[%s0 + $0xd0] sm:$0xff]
  %v44 = vld [vmem:[%s0 + $0xd8] sm:$0xff]
  %v45 = vld [vmem:[%s0 + $0xe0] sm:$0xff]
  %v46 = vld [vmem:[%s0 + $0xe8] sm:$0xff]
  %v47 = vld [vmem:[%s0 + $0xf0] sm:$0xff]
  %v48 = vld [vmem:[%s0 + $0xf8] sm:$0xff]
  %v49 = vld [vmem:[%s0 + $0x100] sm:$0xff]
  %v50 = vld [vmem:[%s0 + $0x108] sm:$0xff]
  %v51 = vld [vmem:[%s0 + $0x110] sm:$0xff]
  %v52 = vld [vmem:[%s0 + $0x118] sm:$0xff]
  %v53 = vld [vmem:[%s0 + $0x120] sm:$0xff]
  %v54 = vld [vmem:[%s0 + $0x128] sm:$0xff]
  %v55 = vld [vmem:[%s0 + $0x130] sm:$0xff]
  %v56 = vld [vmem:[%s0 + $0x138] sm:$0xff]
  %vm57 = vcmask 556032
  %v58 = vsel %vm57, %v18, 0.0
  %v59 = vadd.f32 %v17, %v58
  %60 = vadd.xlane.f32.xlu0 %v59
  %v61 = vpop.xlane.xlu0 %60
  %v62 = vsel %vm57, %v20, 0.0
  %v63 = vadd.f32 %v19, %v62
  %64 = vadd.xlane.f32.xlu0 %v63
  %v65 = vpop.xlane.xlu0 %64
  %v66 = vsel %vm57, %v22, 0.0
  %v67 = vadd.f32 %v21, %v66
  %68 = vadd.xlane.f32.xlu0 %v67
  %v69 = vpop.xlane.xlu0 %68
  %v70 = vsel %vm57, %v24, 0.0
  %v71 = vadd.f32 %v23, %v70
  %72 = vadd.xlane.f32.xlu0 %v71
  %v73 = vpop.xlane.xlu0 %72
  %v74 = vsel %vm57, %v26, 0.0
  %v75 = vadd.f32 %v25, %v74
  %76 = vadd.xlane.f32.xlu0 %v75
  %v77 = vpop.xlane.xlu0 %76
  %v78 = vsel %vm57, %v28, 0.0
  %v79 = vadd.f32 %v27, %v78
  %80 = vadd.xlane.f32.xlu0 %v79
  %v81 = vpop.xlane.xlu0 %80
  %v82 = vsel %vm57, %v30, 0.0
  %v83 = vadd.f32 %v29, %v82
  %84 = vadd.xlane.f32.xlu0 %v83
  %v85 = vpop.xlane.xlu0 %84
  %v86 = vsel %vm57, %v32, 0.0
  %v87 = vadd.f32 %v31, %v86
  %88 = vadd.xlane.f32.xlu0 %v87
  %v89 = vpop.xlane.xlu0 %88
  %v90 = vsel %vm57, %v34, 0.0
  %v91 = vadd.f32 %v33, %v90
  %92 = vadd.xlane.f32.xlu0 %v91
  %v93 = vpop.xlane.xlu0 %92
  %v94 = vsel %vm57, %v36, 0.0
  %v95 = vadd.f32 %v35, %v94
  %96 = vadd.xlane.f32.xlu0 %v95
  %v97 = vpop.xlane.xlu0 %96
  %v98 = vsel %vm57, %v38, 0.0
  %v99 = vadd.f32 %v37, %v98
  %100 = vadd.xlane.f32.xlu0 %v99
  %v101 = vpop.xlane.xlu0 %100
  %v102 = vsel %vm57, %v40, 0.0
  %v103 = vadd.f32 %v39, %v102
  %104 = vadd.xlane.f32.xlu0 %v103
  %v105 = vpop.xlane.xlu0 %104
  %v106 = vsel %vm57, %v42, 0.0
  %v107 = vadd.f32 %v41, %v106
  %108 = vadd.xlane.f32.xlu0 %v107
  %v109 = vpop.xlane.xlu0 %108
  %v110 = vsel %vm57, %v44, 0.0
  %v111 = vadd.f32 %v43, %v110
  %112 = vadd.xlane.f32.xlu0 %v111
  %v113 = vpop.xlane.xlu0 %112
  %v114 = vsel %vm57, %v46, 0.0
  %v115 = vadd.f32 %v45, %v114
  %116 = vadd.xlane.f32.xlu0 %v115
  %v117 = vpop.xlane.xlu0 %116
  %v118 = vsel %vm57, %v48, 0.0
  %v119 = vadd.f32 %v47, %v118
  %120 = vadd.xlane.f32.xlu0 %v119
  %v121 = vpop.xlane.xlu0 %120
  %v122 = vsel %vm57, %v50, 0.0
  %v123 = vadd.f32 %v49, %v122
  %124 = vadd.xlane.f32.xlu0 %v123
  %v125 = vpop.xlane.xlu0 %124
  %v126 = vsel %vm57, %v52, 0.0
  %v127 = vadd.f32 %v51, %v126
  %128 = vadd.xlane.f32.xlu0 %v127
  %v129 = vpop.xlane.xlu0 %128
  %v130 = vsel %vm57, %v54, 0.0
  %v131 = vadd.f32 %v53, %v130
  %132 = vadd.xlane.f32.xlu0 %v131
  %v133 = vpop.xlane.xlu0 %132
  %v134 = vsel %vm57, %v56, 0.0
  %v135 = vadd.f32 %v55, %v134
  %136 = vadd.xlane.f32.xlu0 %v135
  %v137 = vpop.xlane.xlu0 %136
  %v138 = vmul.f32 %v61, 0.0051020407
  %v139 = vmul.f32 %v65, 0.0051020407
  %v140 = vmul.f32 %v69, 0.0051020407
  %v141 = vmul.f32 %v73, 0.0051020407
  %v142 = vmul.f32 %v77, 0.0051020407
  %v143 = vmul.f32 %v81, 0.0051020407
  %v144 = vmul.f32 %v85, 0.0051020407
  %v145 = vmul.f32 %v89, 0.0051020407
  %v146 = vmul.f32 %v93, 0.0051020407
  %v147 = vmul.f32 %v97, 0.0051020407
  %v148 = vmul.f32 %v101, 0.0051020407
  %v149 = vmul.f32 %v105, 0.0051020407
  %v150 = vmul.f32 %v109, 0.0051020407
  %v151 = vmul.f32 %v113, 0.0051020407
  %v152 = vmul.f32 %v117, 0.0051020407
  %v153 = vmul.f32 %v121, 0.0051020407
  %v154 = vmul.f32 %v125, 0.0051020407
  %v155 = vmul.f32 %v129, 0.0051020407
  %v156 = vmul.f32 %v133, 0.0051020407
  %v157 = vmul.f32 %v137, 0.0051020407
  %v158 = vsub.f32 %v17, %v138
  %v159 = vsub.f32 %v18, %v138
  %v160 = vsub.f32 %v19, %v139
  %v161 = vsub.f32 %v20, %v139
  %v162 = vsub.f32 %v21, %v140
  %v163 = vsub.f32 %v22, %v140
  %v164 = vsub.f32 %v23, %v141
  %v165 = vsub.f32 %v24, %v141
  %v166 = vsub.f32 %v25, %v142
  %v167 = vsub.f32 %v26, %v142
  %v168 = vsub.f32 %v27, %v143
  %v169 = vsub.f32 %v28, %v143
  %v170 = vsub.f32 %v29, %v144
  %v171 = vsub.f32 %v30, %v144
  %v172 = vsub.f32 %v31, %v145
  %v173 = vsub.f32 %v32, %v145
  %v174 = vsub.f32 %v33, %v146
  %v175 = vsub.f32 %v34, %v146
  %v176 = vsub.f32 %v35, %v147
  %v177 = vsub.f32 %v36, %v147
  %v178 = vsub.f32 %v37, %v148
  %v179 = vsub.f32 %v38, %v148
  %v180 = vsub.f32 %v39, %v149
  %v181 = vsub.f32 %v40, %v149
  %v182 = vsub.f32 %v41, %v150
  %v183 = vsub.f32 %v42, %v150
  %v184 = vsub.f32 %v43, %v151
  %v185 = vsub.f32 %v44, %v151
  %v186 = vsub.f32 %v45, %v152
  %v187 = vsub.f32 %v46, %v152
  %v188 = vsub.f32 %v47, %v153
  %v189 = vsub.f32 %v48, %v153
  %v190 = vsub.f32 %v49, %v154
  %v191 = vsub.f32 %v50, %v154
  %v192 = vsub.f32 %v51, %v155
  %v193 = vsub.f32 %v52, %v155
  %v194 = vsub.f32 %v53, %v156
  %v195 = vsub.f32 %v54, %v156
  %v196 = vsub.f32 %v55, %v157
  %v197 = vsub.f32 %v56, %v157
  %v198 = vmul.f32 %v158, %v158
  %v199 = vmul.f32 %v159, %v159
  %v200 = vmul.f32 %v160, %v160
  %v201 = vmul.f32 %v161, %v161
  %v202 = vmul.f32 %v162, %v162
  %v203 = vmul.f32 %v163, %v163
  %v204 = vmul.f32 %v164, %v164
  %v205 = vmul.f32 %v165, %v165
  %v206 = vmul.f32 %v166, %v166
  %v207 = vmul.f32 %v167, %v167
  %v208 = vmul.f32 %v168, %v168
  %v209 = vmul.f32 %v169, %v169
  %v210 = vmul.f32 %v170, %v170
  %v211 = vmul.f32 %v171, %v171
  %v212 = vmul.f32 %v172, %v172
  %v213 = vmul.f32 %v173, %v173
  %v214 = vmul.f32 %v174, %v174
  %v215 = vmul.f32 %v175, %v175
  %v216 = vmul.f32 %v176, %v176
  %v217 = vmul.f32 %v177, %v177
  %v218 = vmul.f32 %v178, %v178
  %v219 = vmul.f32 %v179, %v179
  %v220 = vmul.f32 %v180, %v180
  %v221 = vmul.f32 %v181, %v181
  %v222 = vmul.f32 %v182, %v182
  %v223 = vmul.f32 %v183, %v183
  %v224 = vmul.f32 %v184, %v184
  %v225 = vmul.f32 %v185, %v185
  %v226 = vmul.f32 %v186, %v186
  %v227 = vmul.f32 %v187, %v187
  %v228 = vmul.f32 %v188, %v188
  %v229 = vmul.f32 %v189, %v189
  %v230 = vmul.f32 %v190, %v190
  %v231 = vmul.f32 %v191, %v191
  %v232 = vmul.f32 %v192, %v192
  %v233 = vmul.f32 %v193, %v193
  %v234 = vmul.f32 %v194, %v194
  %v235 = vmul.f32 %v195, %v195
  %v236 = vmul.f32 %v196, %v196
  %v237 = vmul.f32 %v197, %v197
  %v238 = vsel %vm57, %v199, 0.0
  %v239 = vadd.f32 %v198, %v238
  %240 = vadd.xlane.f32.xlu0 %v239
  %v241 = vpop.xlane.xlu0 %240
  %v242 = vsel %vm57, %v201, 0.0
  %v243 = vadd.f32 %v200, %v242
  %244 = vadd.xlane.f32.xlu0 %v243
  %v245 = vpop.xlane.xlu0 %244
  %v246 = vsel %vm57, %v203, 0.0
  %v247 = vadd.f32 %v202, %v246
  %248 = vadd.xlane.f32.xlu0 %v247
  %v249 = vpop.xlane.xlu0 %248
  %v250 = vsel %vm57, %v205, 0.0
  %v251 = vadd.f32 %v204, %v250
  %252 = vadd.xlane.f32.xlu0 %v251
  %v253 = vpop.xlane.xlu0 %252
  %v254 = vsel %vm57, %v207, 0.0
  %v255 = vadd.f32 %v206, %v254
  %256 = vadd.xlane.f32.xlu0 %v255
  %v257 = vpop.xlane.xlu0 %256
  %v258 = vsel %vm57, %v209, 0.0
  %v259 = vadd.f32 %v208, %v258
  %260 = vadd.xlane.f32.xlu0 %v259
  %v261 = vpop.xlane.xlu0 %260
  %v262 = vsel %vm57, %v211, 0.0
  %v263 = vadd.f32 %v210, %v262
  %264 = vadd.xlane.f32.xlu0 %v263
  %v265 = vpop.xlane.xlu0 %264
  %v266 = vsel %vm57, %v213, 0.0
  %v267 = vadd.f32 %v212, %v266
  %268 = vadd.xlane.f32.xlu0 %v267
  %v269 = vpop.xlane.xlu0 %268
  %v270 = vsel %vm57, %v215, 0.0
  %v271 = vadd.f32 %v214, %v270
  %272 = vadd.xlane.f32.xlu0 %v271
  %v273 = vpop.xlane.xlu0 %272
  %v274 = vsel %vm57, %v217, 0.0
  %v275 = vadd.f32 %v216, %v274
  %276 = vadd.xlane.f32.xlu0 %v275
  %v277 = vpop.xlane.xlu0 %276
  %v278 = vsel %vm57, %v219, 0.0
  %v279 = vadd.f32 %v218, %v278
  %280 = vadd.xlane.f32.xlu0 %v279
  %v281 = vpop.xlane.xlu0 %280
  %v282 = vsel %vm57, %v221, 0.0
  %v283 = vadd.f32 %v220, %v282
  %284 = vadd.xlane.f32.xlu0 %v283
  %v285 = vpop.xlane.xlu0 %284
  %v286 = vsel %vm57, %v223, 0.0
  %v287 = vadd.f32 %v222, %v286
  %288 = vadd.xlane.f32.xlu0 %v287
  %v289 = vpop.xlane.xlu0 %288
  %v290 = vsel %vm57, %v225, 0.0
  %v291 = vadd.f32 %v224, %v290
  %292 = vadd.xlane.f32.xlu0 %v291
  %v293 = vpop.xlane.xlu0 %292
  %v294 = vsel %vm57, %v227, 0.0
  %v295 = vadd.f32 %v226, %v294
  %296 = vadd.xlane.f32.xlu0 %v295
  %v297 = vpop.xlane.xlu0 %296
  %v298 = vsel %vm57, %v229, 0.0
  %v299 = vadd.f32 %v228, %v298
  %300 = vadd.xlane.f32.xlu0 %v299
  %v301 = vpop.xlane.xlu0 %300
  %v302 = vsel %vm57, %v231, 0.0
  %v303 = vadd.f32 %v230, %v302
  %304 = vadd.xlane.f32.xlu0 %v303
  %v305 = vpop.xlane.xlu0 %304
  %v306 = vsel %vm57, %v233, 0.0
  %v307 = vadd.f32 %v232, %v306
  %308 = vadd.xlane.f32.xlu0 %v307
  %v309 = vpop.xlane.xlu0 %308
  %v310 = vsel %vm57, %v235, 0.0
  %v311 = vadd.f32 %v234, %v310
  %312 = vadd.xlane.f32.xlu0 %v311
  %v313 = vpop.xlane.xlu0 %312
  %v314 = vsel %vm57, %v237, 0.0
  %v315 = vadd.f32 %v236, %v314
  %316 = vadd.xlane.f32.xlu0 %v315
  %v317 = vpop.xlane.xlu0 %316
  %v318 = vmul.f32 %v241, 0.0051020407
  %v319 = vmul.f32 %v245, 0.0051020407
  %v320 = vmul.f32 %v249, 0.0051020407
  %v321 = vmul.f32 %v253, 0.0051020407
  %v322 = vmul.f32 %v257, 0.0051020407
  %v323 = vmul.f32 %v261, 0.0051020407
  %v324 = vmul.f32 %v265, 0.0051020407
  %v325 = vmul.f32 %v269, 0.0051020407
  %v326 = vmul.f32 %v273, 0.0051020407
  %v327 = vmul.f32 %v277, 0.0051020407
  %v328 = vmul.f32 %v281, 0.0051020407
  %v329 = vmul.f32 %v285, 0.0051020407
  %v330 = vmul.f32 %v289, 0.0051020407
  %v331 = vmul.f32 %v293, 0.0051020407
  %v332 = vmul.f32 %v297, 0.0051020407
  %v333 = vmul.f32 %v301, 0.0051020407
  %v334 = vmul.f32 %v305, 0.0051020407
  %v335 = vmul.f32 %v309, 0.0051020407
  %v336 = vmul.f32 %v313, 0.0051020407
  %v337 = vmul.f32 %v317, 0.0051020407
  %v338 = vadd.f32 %v318, 0.001
  %v339 = vadd.f32 %v319, 0.001
  %v340 = vadd.f32 %v320, 0.001
  %v341 = vadd.f32 %v321, 0.001
  %v342 = vadd.f32 %v322, 0.001
  %v343 = vadd.f32 %v323, 0.001
  %v344 = vadd.f32 %v324, 0.001
  %v345 = vadd.f32 %v325, 0.001
  %v346 = vadd.f32 %v326, 0.001
  %v347 = vadd.f32 %v327, 0.001
  %v348 = vadd.f32 %v328, 0.001
  %v349 = vadd.f32 %v329, 0.001
  %v350 = vadd.f32 %v330, 0.001
  %v351 = vadd.f32 %v331, 0.001
  %v352 = vadd.f32 %v332, 0.001
  %v353 = vadd.f32 %v333, 0.001
  %v354 = vadd.f32 %v334, 0.001
  %v355 = vadd.f32 %v335, 0.001
  %v356 = vadd.f32 %v336, 0.001
  %v357 = vadd.f32 %v337, 0.001
  %v358 = vrsqrt.pop %v338
  %v359 = vmul.f32 %v358, %v338
  %v360 = vmul.f32 %v359, %v358
  %v361 = vmul.f32 0.5, %v360
  %v362 = vsub.f32 1.5, %v361
  %v363 = vmul.f32 %v358, %v362
  %vm364 = vweird.f32 %v338
  %vm365 = vweird.f32 %v358
  %vm366 = vmor %vm364, %vm365
  %v367 = vsel %vm366, %v358, %v363
  %v368 = vrsqrt.pop %v339
  %v369 = vmul.f32 %v368, %v339
  %v370 = vmul.f32 %v369, %v368
  %v371 = vmul.f32 0.5, %v370
  %v372 = vsub.f32 1.5, %v371
  %v373 = vmul.f32 %v368, %v372
  %vm374 = vweird.f32 %v339
  %vm375 = vweird.f32 %v368
  %vm376 = vmor %vm374, %vm375
  %v377 = vsel %vm376, %v368, %v373
  %v378 = vrsqrt.pop %v340
  %v379 = vmul.f32 %v378, %v340
  %v380 = vmul.f32 %v379, %v378
  %v381 = vmul.f32 0.5, %v380
  %v382 = vsub.f32 1.5, %v381
  %v383 = vmul.f32 %v378, %v382
  %vm384 = vweird.f32 %v340
  %vm385 = vweird.f32 %v378
  %vm386 = vmor %vm384, %vm385
  %v387 = vsel %vm386, %v378, %v383
  %v388 = vrsqrt.pop %v341
  %v389 = vmul.f32 %v388, %v341
  %v390 = vmul.f32 %v389, %v388
  %v391 = vmul.f32 0.5, %v390
  %v392 = vsub.f32 1.5, %v391
  %v393 = vmul.f32 %v388, %v392
  %vm394 = vweird.f32 %v341
  %vm395 = vweird.f32 %v388
  %vm396 = vmor %vm394, %vm395
  %v397 = vsel %vm396, %v388, %v393
  %v398 = vrsqrt.pop %v342
  %v399 = vmul.f32 %v398, %v342
  %v400 = vmul.f32 %v399, %v398
  %v401 = vmul.f32 0.5, %v400
  %v402 = vsub.f32 1.5, %v401
  %v403 = vmul.f32 %v398, %v402
  %vm404 = vweird.f32 %v342
  %vm405 = vweird.f32 %v398
  %vm406 = vmor %vm404, %vm405
  %v407 = vsel %vm406, %v398, %v403
  %v408 = vrsqrt.pop %v343
  %v409 = vmul.f32 %v408, %v343
  %v410 = vmul.f32 %v409, %v408
  %v411 = vmul.f32 0.5, %v410
  %v412 = vsub.f32 1.5, %v411
  %v413 = vmul.f32 %v408, %v412
  %vm414 = vweird.f32 %v343
  %vm415 = vweird.f32 %v408
  %vm416 = vmor %vm414, %vm415
  %v417 = vsel %vm416, %v408, %v413
  %v418 = vrsqrt.pop %v344
  %v419 = vmul.f32 %v418, %v344
  %v420 = vmul.f32 %v419, %v418
  %v421 = vmul.f32 0.5, %v420
  %v422 = vsub.f32 1.5, %v421
  %v423 = vmul.f32 %v418, %v422
  %vm424 = vweird.f32 %v344
  %vm425 = vweird.f32 %v418
  %vm426 = vmor %vm424, %vm425
  %v427 = vsel %vm426, %v418, %v423
  %v428 = vrsqrt.pop %v345
  %v429 = vmul.f32 %v428, %v345
  %v430 = vmul.f32 %v429, %v428
  %v431 = vmul.f32 0.5, %v430
  %v432 = vsub.f32 1.5, %v431
  %v433 = vmul.f32 %v428, %v432
  %vm434 = vweird.f32 %v345
  %vm435 = vweird.f32 %v428
  %vm436 = vmor %vm434, %vm435
  %v437 = vsel %vm436, %v428, %v433
  %v438 = vrsqrt.pop %v346
  %v439 = vmul.f32 %v438, %v346
  %v440 = vmul.f32 %v439, %v438
  %v441 = vmul.f32 0.5, %v440
  %v442 = vsub.f32 1.5, %v441
  %v443 = vmul.f32 %v438, %v442
  %vm444 = vweird.f32 %v346
  %vm445 = vweird.f32 %v438
  %vm446 = vmor %vm444, %vm445
  %v447 = vsel %vm446, %v438, %v443
  %v448 = vrsqrt.pop %v347
  %v449 = vmul.f32 %v448, %v347
  %v450 = vmul.f32 %v449, %v448
  %v451 = vmul.f32 0.5, %v450
  %v452 = vsub.f32 1.5, %v451
  %v453 = vmul.f32 %v448, %v452
  %vm454 = vweird.f32 %v347
  %vm455 = vweird.f32 %v448
  %vm456 = vmor %vm454, %vm455
  %v457 = vsel %vm456, %v448, %v453
  %v458 = vrsqrt.pop %v348
  %v459 = vmul.f32 %v458, %v348
  %v460 = vmul.f32 %v459, %v458
  %v461 = vmul.f32 0.5, %v460
  %v462 = vsub.f32 1.5, %v461
  %v463 = vmul.f32 %v458, %v462
  %vm464 = vweird.f32 %v348
  %vm465 = vweird.f32 %v458
  %vm466 = vmor %vm464, %vm465
  %v467 = vsel %vm466, %v458, %v463
  %v468 = vrsqrt.pop %v349
  %v469 = vmul.f32 %v468, %v349
  %v470 = vmul.f32 %v469, %v468
  %v471 = vmul.f32 0.5, %v470
  %v472 = vsub.f32 1.5, %v471
  %v473 = vmul.f32 %v468, %v472
  %vm474 = vweird.f32 %v349
  %vm475 = vweird.f32 %v468
  %vm476 = vmor %vm474, %vm475
  %v477 = vsel %vm476, %v468, %v473
  %v478 = vrsqrt.pop %v350
  %v479 = vmul.f32 %v478, %v350
  %v480 = vmul.f32 %v479, %v478
  %v481 = vmul.f32 0.5, %v480
  %v482 = vsub.f32 1.5, %v481
  %v483 = vmul.f32 %v478, %v482
  %vm484 = vweird.f32 %v350
  %vm485 = vweird.f32 %v478
  %vm486 = vmor %vm484, %vm485
  %v487 = vsel %vm486, %v478, %v483
  %v488 = vrsqrt.pop %v351
  %v489 = vmul.f32 %v488, %v351
  %v490 = vmul.f32 %v489, %v488
  %v491 = vmul.f32 0.5, %v490
  %v492 = vsub.f32 1.5, %v491
  %v493 = vmul.f32 %v488, %v492
  %vm494 = vweird.f32 %v351
  %vm495 = vweird.f32 %v488
  %vm496 = vmor %vm494, %vm495
  %v497 = vsel %vm496, %v488, %v493
  %v498 = vrsqrt.pop %v352
  %v499 = vmul.f32 %v498, %v352
  %v500 = vmul.f32 %v499, %v498
  %v501 = vmul.f32 0.5, %v500
  %v502 = vsub.f32 1.5, %v501
  %v503 = vmul.f32 %v498, %v502
  %vm504 = vweird.f32 %v352
  %vm505 = vweird.f32 %v498
  %vm506 = vmor %vm504, %vm505
  %v507 = vsel %vm506, %v498, %v503
  %v508 = vrsqrt.pop %v353
  %v509 = vmul.f32 %v508, %v353
  %v510 = vmul.f32 %v509, %v508
  %v511 = vmul.f32 0.5, %v510
  %v512 = vsub.f32 1.5, %v511
  %v513 = vmul.f32 %v508, %v512
  %vm514 = vweird.f32 %v353
  %vm515 = vweird.f32 %v508
  %vm516 = vmor %vm514, %vm515
  %v517 = vsel %vm516, %v508, %v513
  %v518 = vrsqrt.pop %v354
  %v519 = vmul.f32 %v518, %v354
  %v520 = vmul.f32 %v519, %v518
  %v521 = vmul.f32 0.5, %v520
  %v522 = vsub.f32 1.5, %v521
  %v523 = vmul.f32 %v518, %v522
  %vm524 = vweird.f32 %v354
  %vm525 = vweird.f32 %v518
  %vm526 = vmor %vm524, %vm525
  %v527 = vsel %vm526, %v518, %v523
  %v528 = vrsqrt.pop %v355
  %v529 = vmul.f32 %v528, %v355
  %v530 = vmul.f32 %v529, %v528
  %v531 = vmul.f32 0.5, %v530
  %v532 = vsub.f32 1.5, %v531
  %v533 = vmul.f32 %v528, %v532
  %vm534 = vweird.f32 %v355
  %vm535 = vweird.f32 %v528
  %vm536 = vmor %vm534, %vm535
  %v537 = vsel %vm536, %v528, %v533
  %v538 = vrsqrt.pop %v356
  %v539 = vmul.f32 %v538, %v356
  %v540 = vmul.f32 %v539, %v538
  %v541 = vmul.f32 0.5, %v540
  %v542 = vsub.f32 1.5, %v541
  %v543 = vmul.f32 %v538, %v542
  %vm544 = vweird.f32 %v356
  %vm545 = vweird.f32 %v538
  %vm546 = vmor %vm544, %vm545
  %v547 = vsel %vm546, %v538, %v543
  %v548 = vrsqrt.pop %v357
  %v549 = vmul.f32 %v548, %v357
  %v550 = vmul.f32 %v549, %v548
  %v551 = vmul.f32 0.5, %v550
  %v552 = vsub.f32 1.5, %v551
  %v553 = vmul.f32 %v548, %v552
  %vm554 = vweird.f32 %v357
  %vm555 = vweird.f32 %v548
  %vm556 = vmor %vm554, %vm555
  %v557 = vsel %vm556, %v548, %v553
  %v558 = vld [vmem:[%s1] sm:$0xff]
  %v559 = vld [vmem:[%s1 + $0x8] sm:$0xff]
  %v560 = vld [vmem:[%s1 + $0x10] sm:$0xff]
  %v561 = vld [vmem:[%s1 + $0x18] sm:$0xff]
  %v562 = vld [vmem:[%s1 + $0x20] sm:$0xff]
  %v563 = vld [vmem:[%s1 + $0x28] sm:$0xff]
  %v564 = vld [vmem:[%s1 + $0x30] sm:$0xff]
  %v565 = vld [vmem:[%s1 + $0x38] sm:$0xff]
  %v566 = vld [vmem:[%s1 + $0x40] sm:$0xff]
  %v567 = vld [vmem:[%s1 + $0x48] sm:$0xff]
  %v568 = vld [vmem:[%s1 + $0x50] sm:$0xff]
  %v569 = vld [vmem:[%s1 + $0x58] sm:$0xff]
  %v570 = vld [vmem:[%s1 + $0x60] sm:$0xff]
  %v571 = vld [vmem:[%s1 + $0x68] sm:$0xff]
  %v572 = vld [vmem:[%s1 + $0x70] sm:$0xff]
  %v573 = vld [vmem:[%s1 + $0x78] sm:$0xff]
  %v574 = vld [vmem:[%s1 + $0x80] sm:$0xff]
  %v575 = vld [vmem:[%s1 + $0x88] sm:$0xff]
  %v576 = vld [vmem:[%s1 + $0x90] sm:$0xff]
  %v577 = vld [vmem:[%s1 + $0x98] sm:$0xff]
  %v578 = vmul.f32 %v367, %v558
  %v579 = vmul.f32 %v377, %v559
  %v580 = vmul.f32 %v387, %v560
  %v581 = vmul.f32 %v397, %v561
  %v582 = vmul.f32 %v407, %v562
  %v583 = vmul.f32 %v417, %v563
  %v584 = vmul.f32 %v427, %v564
  %v585 = vmul.f32 %v437, %v565
  %v586 = vmul.f32 %v447, %v566
  %v587 = vmul.f32 %v457, %v567
  %v588 = vmul.f32 %v467, %v568
  %v589 = vmul.f32 %v477, %v569
  %v590 = vmul.f32 %v487, %v570
  %v591 = vmul.f32 %v497, %v571
  %v592 = vmul.f32 %v507, %v572
  %v593 = vmul.f32 %v517, %v573
  %v594 = vmul.f32 %v527, %v574
  %v595 = vmul.f32 %v537, %v575
  %v596 = vmul.f32 %v547, %v576
  %v597 = vmul.f32 %v557, %v577
  %599 = vset.pattern.permute.xlu0 0
  %600 = vperm.xlu0 %599, %v578
  %v601 = vpop.permute.xlu0 %600
  %604 = vset.pattern.permute.xlu0 0
  %605 = vperm.xlu0 %604, %v579
  %v606 = vpop.permute.xlu0 %605
  %609 = vset.pattern.permute.xlu0 0
  %610 = vperm.xlu0 %609, %v580
  %v611 = vpop.permute.xlu0 %610
  %614 = vset.pattern.permute.xlu0 0
  %615 = vperm.xlu0 %614, %v581
  %v616 = vpop.permute.xlu0 %615
  %619 = vset.pattern.permute.xlu0 0
  %620 = vperm.xlu0 %619, %v582
  %v621 = vpop.permute.xlu0 %620
  %624 = vset.pattern.permute.xlu0 0
  %625 = vperm.xlu0 %624, %v583
  %v626 = vpop.permute.xlu0 %625
  %629 = vset.pattern.permute.xlu0 0
  %630 = vperm.xlu0 %629, %v584
  %v631 = vpop.permute.xlu0 %630
  %634 = vset.pattern.permute.xlu0 0
  %635 = vperm.xlu0 %634, %v585
  %v636 = vpop.permute.xlu0 %635
  %639 = vset.pattern.permute.xlu0 0
  %640 = vperm.xlu0 %639, %v586
  %v641 = vpop.permute.xlu0 %640
  %644 = vset.pattern.permute.xlu0 0
  %645 = vperm.xlu0 %644, %v587
  %v646 = vpop.permute.xlu0 %645
  %649 = vset.pattern.permute.xlu0 0
  %650 = vperm.xlu0 %649, %v588
  %v651 = vpop.permute.xlu0 %650
  %654 = vset.pattern.permute.xlu0 0
  %655 = vperm.xlu0 %654, %v589
  %v656 = vpop.permute.xlu0 %655
  %659 = vset.pattern.permute.xlu0 0
  %660 = vperm.xlu0 %659, %v590
  %v661 = vpop.permute.xlu0 %660
  %664 = vset.pattern.permute.xlu0 0
  %665 = vperm.xlu0 %664, %v591
  %v666 = vpop.permute.xlu0 %665
  %669 = vset.pattern.permute.xlu0 0
  %670 = vperm.xlu0 %669, %v592
  %v671 = vpop.permute.xlu0 %670
  %674 = vset.pattern.permute.xlu0 0
  %675 = vperm.xlu0 %674, %v593
  %v676 = vpop.permute.xlu0 %675
  %679 = vset.pattern.permute.xlu0 0
  %680 = vperm.xlu0 %679, %v594
  %v681 = vpop.permute.xlu0 %680
  %684 = vset.pattern.permute.xlu0 0
  %685 = vperm.xlu0 %684, %v595
  %v686 = vpop.permute.xlu0 %685
  %689 = vset.pattern.permute.xlu0 0
  %690 = vperm.xlu0 %689, %v596
  %v691 = vpop.permute.xlu0 %690
  %694 = vset.pattern.permute.xlu0 0
  %695 = vperm.xlu0 %694, %v597
  %v696 = vpop.permute.xlu0 %695
  %v698 = vmul.f32 %v158, %v601
  %v699 = vmul.f32 %v159, %v601
  %v700 = vmul.f32 %v160, %v606
  %v701 = vmul.f32 %v161, %v606
  %v702 = vmul.f32 %v162, %v611
  %v703 = vmul.f32 %v163, %v611
  %v704 = vmul.f32 %v164, %v616
  %v705 = vmul.f32 %v165, %v616
  %v706 = vmul.f32 %v166, %v621
  %v707 = vmul.f32 %v167, %v621
  %v708 = vmul.f32 %v168, %v626
  %v709 = vmul.f32 %v169, %v626
  %v710 = vmul.f32 %v170, %v631
  %v711 = vmul.f32 %v171, %v631
  %v712 = vmul.f32 %v172, %v636
  %v713 = vmul.f32 %v173, %v636
  %v714 = vmul.f32 %v174, %v641
  %v715 = vmul.f32 %v175, %v641
  %v716 = vmul.f32 %v176, %v646
  %v717 = vmul.f32 %v177, %v646
  %v718 = vmul.f32 %v178, %v651
  %v719 = vmul.f32 %v179, %v651
  %v720 = vmul.f32 %v180, %v656
  %v721 = vmul.f32 %v181, %v656
  %v722 = vmul.f32 %v182, %v661
  %v723 = vmul.f32 %v183, %v661
  %v724 = vmul.f32 %v184, %v666
  %v725 = vmul.f32 %v185, %v666
  %v726 = vmul.f32 %v186, %v671
  %v727 = vmul.f32 %v187, %v671
  %v728 = vmul.f32 %v188, %v676
  %v729 = vmul.f32 %v189, %v676
  %v730 = vmul.f32 %v190, %v681
  %v731 = vmul.f32 %v191, %v681
  %v732 = vmul.f32 %v192, %v686
  %v733 = vmul.f32 %v193, %v686
  %v734 = vmul.f32 %v194, %v691
  %v735 = vmul.f32 %v195, %v691
  %v736 = vmul.f32 %v196, %v696
  %v737 = vmul.f32 %v197, %v696
  %v738 = vld [vmem:[%s2] sm:$0xff]
  %v739 = vld [vmem:[%s2 + $0x8] sm:$0xff]
  %v740 = vld [vmem:[%s2 + $0x10] sm:$0xff]
  %v741 = vld [vmem:[%s2 + $0x18] sm:$0xff]
  %v742 = vld [vmem:[%s2 + $0x20] sm:$0xff]
  %v743 = vld [vmem:[%s2 + $0x28] sm:$0xff]
  %v744 = vld [vmem:[%s2 + $0x30] sm:$0xff]
  %v745 = vld [vmem:[%s2 + $0x38] sm:$0xff]
  %v746 = vld [vmem:[%s2 + $0x40] sm:$0xff]
  %v747 = vld [vmem:[%s2 + $0x48] sm:$0xff]
  %v748 = vld [vmem:[%s2 + $0x50] sm:$0xff]
  %v749 = vld [vmem:[%s2 + $0x58] sm:$0xff]
  %v750 = vld [vmem:[%s2 + $0x60] sm:$0xff]
  %v751 = vld [vmem:[%s2 + $0x68] sm:$0xff]
  %v752 = vld [vmem:[%s2 + $0x70] sm:$0xff]
  %v753 = vld [vmem:[%s2 + $0x78] sm:$0xff]
  %v754 = vld [vmem:[%s2 + $0x80] sm:$0xff]
  %v755 = vld [vmem:[%s2 + $0x88] sm:$0xff]
  %v756 = vld [vmem:[%s2 + $0x90] sm:$0xff]
  %v757 = vld [vmem:[%s2 + $0x98] sm:$0xff]
  %759 = vset.pattern.permute.xlu0 0
  %760 = vperm.xlu0 %759, %v738
  %v761 = vpop.permute.xlu0 %760
  %764 = vset.pattern.permute.xlu0 0
  %765 = vperm.xlu0 %764, %v739
  %v766 = vpop.permute.xlu0 %765
  %769 = vset.pattern.permute.xlu0 0
  %770 = vperm.xlu0 %769, %v740
  %v771 = vpop.permute.xlu0 %770
  %774 = vset.pattern.permute.xlu0 0
  %775 = vperm.xlu0 %774, %v741
  %v776 = vpop.permute.xlu0 %775
  %779 = vset.pattern.permute.xlu0 0
  %780 = vperm.xlu0 %779, %v742
  %v781 = vpop.permute.xlu0 %780
  %784 = vset.pattern.permute.xlu0 0
  %785 = vperm.xlu0 %784, %v743
  %v786 = vpop.permute.xlu0 %785
  %789 = vset.pattern.permute.xlu0 0
  %790 = vperm.xlu0 %789, %v744
  %v791 = vpop.permute.xlu0 %790
  %794 = vset.pattern.permute.xlu0 0
  %795 = vperm.xlu0 %794, %v745
  %v796 = vpop.permute.xlu0 %795
  %799 = vset.pattern.permute.xlu0 0
  %800 = vperm.xlu0 %799, %v746
  %v801 = vpop.permute.xlu0 %800
  %804 = vset.pattern.permute.xlu0 0
  %805 = vperm.xlu0 %804, %v747
  %v806 = vpop.permute.xlu0 %805
  %809 = vset.pattern.permute.xlu0 0
  %810 = vperm.xlu0 %809, %v748
  %v811 = vpop.permute.xlu0 %810
  %814 = vset.pattern.permute.xlu0 0
  %815 = vperm.xlu0 %814, %v749
  %v816 = vpop.permute.xlu0 %815
  %819 = vset.pattern.permute.xlu0 0
  %820 = vperm.xlu0 %819, %v750
  %v821 = vpop.permute.xlu0 %820
  %824 = vset.pattern.permute.xlu0 0
  %825 = vperm.xlu0 %824, %v751
  %v826 = vpop.permute.xlu0 %825
  %829 = vset.pattern.permute.xlu0 0
  %830 = vperm.xlu0 %829, %v752
  %v831 = vpop.permute.xlu0 %830
  %834 = vset.pattern.permute.xlu0 0
  %835 = vperm.xlu0 %834, %v753
  %v836 = vpop.permute.xlu0 %835
  %839 = vset.pattern.permute.xlu0 0
  %840 = vperm.xlu0 %839, %v754
  %v841 = vpop.permute.xlu0 %840
  %844 = vset.pattern.permute.xlu0 0
  %845 = vperm.xlu0 %844, %v755
  %v846 = vpop.permute.xlu0 %845
  %849 = vset.pattern.permute.xlu0 0
  %850 = vperm.xlu0 %849, %v756
  %v851 = vpop.permute.xlu0 %850
  %854 = vset.pattern.permute.xlu0 0
  %855 = vperm.xlu0 %854, %v757
  %v856 = vpop.permute.xlu0 %855
  %v858 = vadd.f32 %v698, %v761
  %v859 = vadd.f32 %v699, %v761
  %v860 = vadd.f32 %v700, %v766
  %v861 = vadd.f32 %v701, %v766
  %v862 = vadd.f32 %v702, %v771
  %v863 = vadd.f32 %v703, %v771
  %v864 = vadd.f32 %v704, %v776
  %v865 = vadd.f32 %v705, %v776
  %v866 = vadd.f32 %v706, %v781
  %v867 = vadd.f32 %v707, %v781
  %v868 = vadd.f32 %v708, %v786
  %v869 = vadd.f32 %v709, %v786
  %v870 = vadd.f32 %v710, %v791
  %v871 = vadd.f32 %v711, %v791
  %v872 = vadd.f32 %v712, %v796
  %v873 = vadd.f32 %v713, %v796
  %v874 = vadd.f32 %v714, %v801
  %v875 = vadd.f32 %v715, %v801
  %v876 = vadd.f32 %v716, %v806
  %v877 = vadd.f32 %v717, %v806
  %v878 = vadd.f32 %v718, %v811
  %v879 = vadd.f32 %v719, %v811
  %v880 = vadd.f32 %v720, %v816
  %v881 = vadd.f32 %v721, %v816
  %v882 = vadd.f32 %v722, %v821
  %v883 = vadd.f32 %v723, %v821
  %v884 = vadd.f32 %v724, %v826
  %v885 = vadd.f32 %v725, %v826
  %v886 = vadd.f32 %v726, %v831
  %v887 = vadd.f32 %v727, %v831
  %v888 = vadd.f32 %v728, %v836
  %v889 = vadd.f32 %v729, %v836
  %v890 = vadd.f32 %v730, %v841
  %v891 = vadd.f32 %v731, %v841
  %v892 = vadd.f32 %v732, %v846
  %v893 = vadd.f32 %v733, %v846
  %v894 = vadd.f32 %v734, %v851
  %v895 = vadd.f32 %v735, %v851
  %v896 = vadd.f32 %v736, %v856
  %v897 = vadd.f32 %v737, %v856
  %898 = vst [vmem:[%s3] sm:$0xff] %v858
  %899 = vst.msk [vmem:[%s3 + $0x8] sm:$0xff] %vm57, %v859
  %900 = vst [vmem:[%s3 + $0x10] sm:$0xff] %v860
  %901 = vst.msk [vmem:[%s3 + $0x18] sm:$0xff] %vm57, %v861
  %902 = vst [vmem:[%s3 + $0x20] sm:$0xff] %v862
  %903 = vst.msk [vmem:[%s3 + $0x28] sm:$0xff] %vm57, %v863
  %904 = vst [vmem:[%s3 + $0x30] sm:$0xff] %v864
  %905 = vst.msk [vmem:[%s3 + $0x38] sm:$0xff] %vm57, %v865
  %906 = vst [vmem:[%s3 + $0x40] sm:$0xff] %v866
  %907 = vst.msk [vmem:[%s3 + $0x48] sm:$0xff] %vm57, %v867
  %908 = vst [vmem:[%s3 + $0x50] sm:$0xff] %v868
  %909 = vst.msk [vmem:[%s3 + $0x58] sm:$0xff] %vm57, %v869
  %910 = vst [vmem:[%s3 + $0x60] sm:$0xff] %v870
  %911 = vst.msk [vmem:[%s3 + $0x68] sm:$0xff] %vm57, %v871
  %912 = vst [vmem:[%s3 + $0x70] sm:$0xff] %v872
  %913 = vst.msk [vmem:[%s3 + $0x78] sm:$0xff] %vm57, %v873
  %914 = vst [vmem:[%s3 + $0x80] sm:$0xff] %v874
  %915 = vst.msk [vmem:[%s3 + $0x88] sm:$0xff] %vm57, %v875
  %916 = vst [vmem:[%s3 + $0x90] sm:$0xff] %v876
  %917 = vst.msk [vmem:[%s3 + $0x98] sm:$0xff] %vm57, %v877
  %918 = vst [vmem:[%s3 + $0xa0] sm:$0xff] %v878
  %919 = vst.msk [vmem:[%s3 + $0xa8] sm:$0xff] %vm57, %v879
  %920 = vst [vmem:[%s3 + $0xb0] sm:$0xff] %v880
  %921 = vst.msk [vmem:[%s3 + $0xb8] sm:$0xff] %vm57, %v881
  %922 = vst [vmem:[%s3 + $0xc0] sm:$0xff] %v882
  %923 = vst.msk [vmem:[%s3 + $0xc8] sm:$0xff] %vm57, %v883
  %924 = vst [vmem:[%s3 + $0xd0] sm:$0xff] %v884
  %925 = vst.msk [vmem:[%s3 + $0xd8] sm:$0xff] %vm57, %v885
  %926 = vst [vmem:[%s3 + $0xe0] sm:$0xff] %v886
  %927 = vst.msk [vmem:[%s3 + $0xe8] sm:$0xff] %vm57, %v887
  %928 = vst [vmem:[%s3 + $0xf0] sm:$0xff] %v888
  %929 = vst.msk [vmem:[%s3 + $0xf8] sm:$0xff] %vm57, %v889
  %930 = vst [vmem:[%s3 + $0x100] sm:$0xff] %v890
  %931 = vst.msk [vmem:[%s3 + $0x108] sm:$0xff] %vm57, %v891
  %932 = vst [vmem:[%s3 + $0x110] sm:$0xff] %v892
  %933 = vst.msk [vmem:[%s3 + $0x118] sm:$0xff] %vm57, %v893
  %934 = vst [vmem:[%s3 + $0x120] sm:$0xff] %v894
  %935 = vst.msk [vmem:[%s3 + $0x128] sm:$0xff] %vm57, %v895
  %936 = vst [vmem:[%s3 + $0x130] sm:$0xff] %v896
  %937 = vst.msk [vmem:[%s3 + $0x138] sm:$0xff] %vm57, %v897
  %vm938 = vcmask 7168
  %939 = vst.msk [vmem:[%s4] sm:$0xff] %vm938, %v138
  %940 = vst.msk [vmem:[%s4 + $0x8] sm:$0xff] %vm938, %v139
  %941 = vst.msk [vmem:[%s4 + $0x10] sm:$0xff] %vm938, %v140
  %942 = vst.msk [vmem:[%s4 + $0x18] sm:$0xff] %vm938, %v141
  %943 = vst.msk [vmem:[%s4 + $0x20] sm:$0xff] %vm938, %v142
  %944 = vst.msk [vmem:[%s4 + $0x28] sm:$0xff] %vm938, %v143
  %945 = vst.msk [vmem:[%s4 + $0x30] sm:$0xff] %vm938, %v144
  %946 = vst.msk [vmem:[%s4 + $0x38] sm:$0xff] %vm938, %v145
  %947 = vst.msk [vmem:[%s4 + $0x40] sm:$0xff] %vm938, %v146
  %948 = vst.msk [vmem:[%s4 + $0x48] sm:$0xff] %vm938, %v147
  %949 = vst.msk [vmem:[%s4 + $0x50] sm:$0xff] %vm938, %v148
  %950 = vst.msk [vmem:[%s4 + $0x58] sm:$0xff] %vm938, %v149
  %951 = vst.msk [vmem:[%s4 + $0x60] sm:$0xff] %vm938, %v150
  %952 = vst.msk [vmem:[%s4 + $0x68] sm:$0xff] %vm938, %v151
  %953 = vst.msk [vmem:[%s4 + $0x70] sm:$0xff] %vm938, %v152
  %954 = vst.msk [vmem:[%s4 + $0x78] sm:$0xff] %vm938, %v153
  %955 = vst.msk [vmem:[%s4 + $0x80] sm:$0xff] %vm938, %v154
  %956 = vst.msk [vmem:[%s4 + $0x88] sm:$0xff] %vm938, %v155
  %957 = vst.msk [vmem:[%s4 + $0x90] sm:$0xff] %vm938, %v156
  %958 = vst.msk [vmem:[%s4 + $0x98] sm:$0xff] %vm938, %v157
  %v959 = vmul.f32 %v318, 1.0051283
  %v960 = vmul.f32 %v319, 1.0051283
  %v961 = vmul.f32 %v320, 1.0051283
  %v962 = vmul.f32 %v321, 1.0051283
  %v963 = vmul.f32 %v322, 1.0051283
  %v964 = vmul.f32 %v323, 1.0051283
  %v965 = vmul.f32 %v324, 1.0051283
  %v966 = vmul.f32 %v325, 1.0051283
  %v967 = vmul.f32 %v326, 1.0051283
  %v968 = vmul.f32 %v327, 1.0051283
  %v969 = vmul.f32 %v328, 1.0051283
  %v970 = vmul.f32 %v329, 1.0051283
  %v971 = vmul.f32 %v330, 1.0051283
  %v972 = vmul.f32 %v331, 1.0051283
  %v973 = vmul.f32 %v332, 1.0051283
  %v974 = vmul.f32 %v333, 1.0051283
  %v975 = vmul.f32 %v334, 1.0051283
  %v976 = vmul.f32 %v335, 1.0051283
  %v977 = vmul.f32 %v336, 1.0051283
  %v978 = vmul.f32 %v337, 1.0051283
  %979 = vst.msk [vmem:[%s5] sm:$0xff] %vm938, %v959
  %980 = vst.msk [vmem:[%s5 + $0x8] sm:$0xff] %vm938, %v960
  %981 = vst.msk [vmem:[%s5 + $0x10] sm:$0xff] %vm938, %v961
  %982 = vst.msk [vmem:[%s5 + $0x18] sm:$0xff] %vm938, %v962
  %983 = vst.msk [vmem:[%s5 + $0x20] sm:$0xff] %vm938, %v963
  %984 = vst.msk [vmem:[%s5 + $0x28] sm:$0xff] %vm938, %v964
  %985 = vst.msk [vmem:[%s5 + $0x30] sm:$0xff] %vm938, %v965
  %986 = vst.msk [vmem:[%s5 + $0x38] sm:$0xff] %vm938, %v966
  %987 = vst.msk [vmem:[%s5 + $0x40] sm:$0xff] %vm938, %v967
  %988 = vst.msk [vmem:[%s5 + $0x48] sm:$0xff] %vm938, %v968
  %989 = vst.msk [vmem:[%s5 + $0x50] sm:$0xff] %vm938, %v969
  %990 = vst.msk [vmem:[%s5 + $0x58] sm:$0xff] %vm938, %v970
  %991 = vst.msk [vmem:[%s5 + $0x60] sm:$0xff] %vm938, %v971
  %992 = vst.msk [vmem:[%s5 + $0x68] sm:$0xff] %vm938, %v972
  %993 = vst.msk [vmem:[%s5 + $0x70] sm:$0xff] %vm938, %v973
  %994 = vst.msk [vmem:[%s5 + $0x78] sm:$0xff] %vm938, %v974
  %995 = vst.msk [vmem:[%s5 + $0x80] sm:$0xff] %vm938, %v975
  %996 = vst.msk [vmem:[%s5 + $0x88] sm:$0xff] %vm938, %v976
  %997 = vst.msk [vmem:[%s5 + $0x90] sm:$0xff] %vm938, %v977
  %998 = vst.msk [vmem:[%s5 + $0x98] sm:$0xff] %vm938, %v978
  // Predicated region
  $region14: #{tpu_custom_call.1} parent=0 // pred_check
    _
  $region15: #{tpu_custom_call.1} parent=0 // pred_check_branch
    %1000 = sbr.rel (0) target = $region17
  $region16: #{tpu_custom_call.1} parent=0 // pred_region
    _
  $region17: #{tpu_custom_call.1} parent=0 // pred_fallthru
    _
  // Predicated region
  $region18: #{tpu_custom_call.1} parent=0 // pred_check
    _
  $region19: #{tpu_custom_call.1} parent=0 // pred_check_branch
    %1002 = sbr.rel (0) target = $region21
  $region20: #{tpu_custom_call.1} parent=0 // pred_region
    _
  $region21: #{tpu_custom_call.1} parent=0 // pred_fallthru
    _
  // Predicated region
  $region22: #{tpu_custom_call.1} parent=0 // pred_check
    _
  $region23: #{tpu_custom_call.1} parent=0 // pred_check_branch
    %1004 = sbr.rel (0) target = $region25
  $region24: #{tpu_custom_call.1} parent=0 // pred_region
    _
  $region25: #{tpu_custom_call.1} parent=0 // pred_fallthru
    _
  // Predicated region
  $region26: #{tpu_custom_call.1} parent=0 // pred_check
    _
  $region27: #{tpu_custom_call.1} parent=0 // pred_check_branch
    %1006 = sbr.rel (0) target = $region29
  $region28: #{tpu_custom_call.1} parent=0 // pred_region
    _
  $region29: #{tpu_custom_call.1} parent=0 // pred_fallthru
    _
  // Predicated region
  $region30: #{tpu_custom_call.1} parent=0 // pred_check
    _
  $region31: #{tpu_custom_call.1} parent=0 // pred_check_branch
    %1008 = sbr.rel (0) target = $region33
  $region32: #{tpu_custom_call.1} parent=0 // pred_region
    _
  $region33: #{tpu_custom_call.1} parent=0 // pred_fallthru
    _
  // Predicated region
  $region34: #{tpu_custom_call.1} parent=0 // pred_check
    _
  $region35: #{tpu_custom_call.1} parent=0 // pred_check_branch
    %1010 = sbr.rel (0) target = $region37
  $region36: #{tpu_custom_call.1} parent=0 // pred_region
    _
  $region37: #{tpu_custom_call.1} parent=0 // pred_fallthru
    _

</llo_original>
